<compile_context>
chip_gen: v5e
topology: v5e:2x2
jax: 0.10.0
libtpu: 0.0.40
codegen_flags: <defaults>
</compile_context>

<pallas_src>
import functools

import jax
import jax.numpy as jnp
from jax.experimental import pallas as pl
from jax.experimental.pallas import tpu as pltpu


def _mix_softmax_kernel(ctx_ref, wp_ref, bp_ref, wl_ref, bl_ref, wd_ref, bd_ref,
                        out_ref, *, n_components, ninp):
    """One token-tile of the mixture-of-softmaxes head.

    ctx_ref : (T, H)                         context tile
    wp_ref  : (H, K)      bp_ref : (1, K)        prior linear
    wl_ref  : (H, K*ninp) bl_ref : (1, K*ninp)   latent linear
    wd_ref  : (ninp, C)   bd_ref : (1, C)        decoder linear
    out_ref : (T, C)                         mixed class probabilities
    """
    K = n_components
    T = ctx_ref.shape[0]
    ctx = ctx_ref[...]  # native dtype; MXU accumulates in f32 via preferred_element_type

    # ---- prior: softmax over the K mixture components (f32 math) ------------
    p_logits = jnp.dot(ctx, wp_ref[...], preferred_element_type=jnp.float32)
    p_logits = p_logits + bp_ref[...].astype(jnp.float32)
    p_logits = p_logits - jnp.max(p_logits, axis=-1, keepdims=True)
    p_exp = jnp.exp(p_logits)
    priors = p_exp * pl.reciprocal(
        jnp.sum(p_exp, axis=-1, keepdims=True), approx=True)          # (T, K)

    # ---- latent: H -> K*ninp, tanh the whole slab in one lane-dense pass ----
    latent = jnp.dot(ctx, wl_ref[...], preferred_element_type=jnp.float32)
    latent = jnp.tanh(latent + bl_ref[...].astype(jnp.float32))       # (T, K*ninp)

    # ---- fused decoder: one matmul over all K components ---------------------
    # Stack the K chunks along the sublane axis -> (K*T, ninp); single MXU pass.
    h_all = jnp.concatenate(
        [latent[:, k * ninp:(k + 1) * ninp] for k in range(K)], axis=0)
    logits = jnp.dot(h_all.astype(wd_ref.dtype), wd_ref[...],
                     preferred_element_type=jnp.float32)
    logits = logits + bd_ref[...].astype(jnp.float32)                 # (K*T, C)
    logits = logits - jnp.max(logits, axis=-1, keepdims=True)
    e = jnp.exp(logits)
    sm = e * pl.reciprocal(
        jnp.sum(e, axis=-1, keepdims=True), approx=True)              # (K*T, C)

    # ---- convex mixture: sum_k prior_k * softmax_k ---------------------------
    acc = priors[:, 0:1] * sm[0:T, :]
    for k in range(1, K):  # K is small & static: unrolled at trace time
        acc = acc + priors[:, k:k + 1] * sm[k * T:(k + 1) * T, :]
    out_ref[...] = acc.astype(out_ref.dtype)


def mix_softmax_forward(context, params, *, n_components, ninp, n_classes,
                        token_tile=128):
    """context: (B, S, nlasthid)  ->  (B, S, n_classes)."""
    B, S, H = context.shape
    N = B * S
    ctx2d = context.reshape(N, H)

    # Clamp the token tile to the (8-aligned) token count so small problems do
    # not waste compute on padded rows; large problems keep 128-row tiles.
    token_tile = min(token_tile, max(8, ((N + 7) // 8) * 8))

    # Pad the token count up to a tile multiple (masked tail rows are sliced
    # off after the call; zero rows produce finite softmaxes, never NaN).
    n_tiles = pl.cdiv(N, token_tile)
    n_pad = n_tiles * token_tile
    if n_pad != N:
        ctx2d = jnp.pad(ctx2d, ((0, n_pad - N), (0, 0)))

    wp, bp, wl, bl, wd, bd = params
    K = n_components
    C = n_classes

    kernel = functools.partial(_mix_softmax_kernel,
                               n_components=n_components, ninp=ninp)

    itemsize = jnp.dtype(context.dtype).itemsize
    cost = pl.CostEstimate(
        flops=2 * n_pad * H * (K + K * ninp) + 2 * n_pad * K * ninp * C
              + 4 * n_pad * K * C,
        transcendentals=n_pad * (K * ninp + K + K * C),
        bytes_accessed=(n_pad * H + n_pad * C) * itemsize
                       + (H * K + K + H * K * ninp + K * ninp
                          + ninp * C + C) * itemsize,
    )

    out2d = pl.pallas_call(
        kernel,
        out_shape=jax.ShapeDtypeStruct((n_pad, C), context.dtype),
        grid_spec=pltpu.PrefetchScalarGridSpec(
            num_scalar_prefetch=0,
            grid=(n_tiles,),
            in_specs=[
                pl.BlockSpec((token_tile, H), lambda i: (i, 0)),      # context tile
                pl.BlockSpec((H, K), lambda i: (0, 0)),               # prior W^T
                pl.BlockSpec((1, K), lambda i: (0, 0)),               # prior b
                pl.BlockSpec((H, K * ninp), lambda i: (0, 0)),        # latent W^T
                pl.BlockSpec((1, K * ninp), lambda i: (0, 0)),        # latent b
                pl.BlockSpec((ninp, C), lambda i: (0, 0)),            # decoder W^T
                pl.BlockSpec((1, C), lambda i: (0, 0)),               # decoder b
            ],
            out_specs=pl.BlockSpec((token_tile, C), lambda i: (i, 0)),
        ),
        compiler_params=pltpu.CompilerParams(
            dimension_semantics=("parallel",),
            vmem_limit_bytes=64 * 1024 * 1024),
        cost_estimate=cost,
    )(ctx2d, wp, bp, wl, bl, wd, bd)

    return out2d[:N].reshape(B, S, C)


def mix_softmax_reference(context, params, *, n_components, ninp, n_classes):
    """Pure-JAX reference mirroring the PyTorch forward (dim == 3 branch)."""
    wp, bp, wl, bl, wd, bd = params
    B, S, H = context.shape
    priors = jax.nn.softmax(context @ wp + bp, axis=-1).reshape(-1, n_components)
    latent = (context @ wl + bl).reshape(-1, n_components, ninp)
    latent = jax.nn.softmax(jnp.tanh(latent) @ wd + bd, axis=-1)
    out = (priors[:, :, None] * latent).sum(1)
    return out.reshape(B, S, n_classes)


def init_params(key, *, nlasthid, n_components, ninp, n_classes, dtype=jnp.float32):
    """Deterministic parameter init (mirrors init_weights: uniform(-0.1, 0.1))."""
    initrange = 0.1
    ks = jax.random.split(key, 6)
    # Stored already transposed (in, out) so the kernel does x @ W directly.
    wp = jax.random.uniform(ks[0], (nlasthid, n_components), dtype, -initrange, initrange)
    bp = jax.random.uniform(ks[1], (1, n_components), dtype, -initrange, initrange)
    wl = jax.random.uniform(ks[2], (nlasthid, n_components * ninp), dtype, -initrange, initrange)
    bl = jax.random.uniform(ks[3], (1, n_components * ninp), dtype, -initrange, initrange)
    wd = jax.random.uniform(ks[4], (ninp, n_classes), dtype, -initrange, initrange)
    bd = jax.random.uniform(ks[5], (1, n_classes), dtype, -initrange, initrange)
    return (wp, bp, wl, bl, wd, bd)


if __name__ == "__main__":
    # Small shapes consistent with the module's forward (3-D context branch).
    batch, seq = 2, 8
    nlasthid = 32      # last hidden dim of the deep network
    ninp = 32          # embedding size
    n_components = 4   # number of softmaxes in the mixture
    n_classes = 128    # vocabulary / class count

    key = jax.random.PRNGKey(0)
    k_ctx, k_par = jax.random.split(key)
    context = jax.random.normal(k_ctx, (batch, seq, nlasthid), jnp.float32)
    params = init_params(k_par, nlasthid=nlasthid, n_components=n_components,
                         ninp=ninp, n_classes=n_classes)

    out = mix_softmax_forward(context, params,
                              n_components=n_components, ninp=ninp,
                              n_classes=n_classes, token_tile=128)
    out = jax.block_until_ready(out)

    ref = mix_softmax_reference(context, params,
                                n_components=n_components, ninp=ninp,
                                n_classes=n_classes)
    assert out.shape == (batch, seq, n_classes)
    # Each row is a convex mixture of softmaxes -> sums to ~1 (approx vrcp).
    assert jnp.allclose(out.sum(-1), 1.0, atol=1e-2)
    # Tolerance loosened for pl.reciprocal(approx=True).
    assert jnp.allclose(out, ref, rtol=1e-2, atol=1e-4)

    print("KERNEL_OK")
</pallas_src>

<mosaic_0001>
module attributes {stable_mosaic.version = 11 : i64} {
  func.func @_mix_softmax_kernel(%arg0: i32, %arg1: memref<16x32xf32, #tpu.memory_space<vmem>>, %arg2: memref<32x4xf32, #tpu.memory_space<vmem>>, %arg3: memref<1x4xf32, #tpu.memory_space<vmem>>, %arg4: memref<32x128xf32, #tpu.memory_space<vmem>>, %arg5: memref<1x128xf32, #tpu.memory_space<vmem>>, %arg6: memref<32x128xf32, #tpu.memory_space<vmem>>, %arg7: memref<1x128xf32, #tpu.memory_space<vmem>>, %arg8: memref<16x128xf32, #tpu.memory_space<vmem>>) attributes {dimension_semantics = [#tpu.dimension_semantics<parallel>], iteration_bounds = array<i64: 1>, scalar_prefetch = 0 : i64, scratch_operands = 0 : i64, tpu.core_type = #tpu.core_type<tc>, window_params = [{transform_indices = @transform_0, window_bounds = array<i64: 16, 32>}, {pipeline_mode = #tpu.pipeline_mode<synchronous>, transform_indices = @transform_1, window_bounds = array<i64: 32, 4>}, {pipeline_mode = #tpu.pipeline_mode<synchronous>, transform_indices = @transform_2, window_bounds = array<i64: 1, 4>}, {pipeline_mode = #tpu.pipeline_mode<synchronous>, transform_indices = @transform_3, window_bounds = array<i64: 32, 128>}, {pipeline_mode = #tpu.pipeline_mode<synchronous>, transform_indices = @transform_4, window_bounds = array<i64: 1, 128>}, {pipeline_mode = #tpu.pipeline_mode<synchronous>, transform_indices = @transform_5, window_bounds = array<i64: 32, 128>}, {pipeline_mode = #tpu.pipeline_mode<synchronous>, transform_indices = @transform_6, window_bounds = array<i64: 1, 128>}, {transform_indices = @transform_7, window_bounds = array<i64: 16, 128>}]} {
    %c0 = arith.constant 0 : index
    %c0_0 = arith.constant 0 : index
    %0 = vector.load %arg1[%c0, %c0_0] : memref<16x32xf32, #tpu.memory_space<vmem>>, vector<16x32xf32>
    %c0_1 = arith.constant 0 : index
    %c0_2 = arith.constant 0 : index
    %1 = vector.load %arg2[%c0_1, %c0_2] : memref<32x4xf32, #tpu.memory_space<vmem>>, vector<32x4xf32>
    %cst = arith.constant dense<0.000000e+00> : vector<16x4xf32>
    %2 = tpu.matmul %0, %1, %cst {dimension_numbers = #tpu.dot_dimension_numbers<[1], [0], [0], [1], [0, 0, 1, 1], [], []>} : vector<16x32xf32>, vector<32x4xf32>, vector<16x4xf32> -> vector<16x4xf32>
    %c0_3 = arith.constant 0 : index
    %c0_4 = arith.constant 0 : index
    %3 = vector.load %arg3[%c0_3, %c0_4] : memref<1x4xf32, #tpu.memory_space<vmem>>, vector<1x4xf32>
    %4 = vector.broadcast %3 : vector<1x4xf32> to vector<16x4xf32>
    %5 = arith.addf %2, %4 : vector<16x4xf32>
    %cst_5 = arith.constant dense<0xFF800000> : vector<16xf32>
    %6 = vector.multi_reduction <maximumf>, %5, %cst_5 [1] : vector<16x4xf32> to vector<16xf32>
    %7 = vector.shape_cast %6 : vector<16xf32> to vector<16x1xf32>
    %8 = vector.broadcast %7 : vector<16x1xf32> to vector<16x4xf32>
    %9 = arith.subf %5, %8 : vector<16x4xf32>
    %10 = math.exp %9 : vector<16x4xf32>
    %cst_6 = arith.constant dense<0.000000e+00> : vector<16xf32>
    %11 = vector.multi_reduction <add>, %10, %cst_6 [1] : vector<16x4xf32> to vector<16xf32>
    %12 = vector.shape_cast %11 : vector<16xf32> to vector<16x1xf32>
    %13 = tpu.reciprocal %12 {approx = true} : vector<16x1xf32> -> vector<16x1xf32>
    %14 = vector.broadcast %13 : vector<16x1xf32> to vector<16x4xf32>
    %15 = arith.mulf %10, %14 : vector<16x4xf32>
    %c0_7 = arith.constant 0 : index
    %c0_8 = arith.constant 0 : index
    %16 = vector.load %arg4[%c0_7, %c0_8] : memref<32x128xf32, #tpu.memory_space<vmem>>, vector<32x128xf32>
    %cst_9 = arith.constant dense<0.000000e+00> : vector<16x128xf32>
    %17 = tpu.matmul %0, %16, %cst_9 {dimension_numbers = #tpu.dot_dimension_numbers<[1], [0], [0], [1], [0, 0, 1, 1], [], []>} : vector<16x32xf32>, vector<32x128xf32>, vector<16x128xf32> -> vector<16x128xf32>
    %c0_10 = arith.constant 0 : index
    %c0_11 = arith.constant 0 : index
    %18 = vector.load %arg5[%c0_10, %c0_11] : memref<1x128xf32, #tpu.memory_space<vmem>>, vector<1x128xf32>
    %19 = vector.broadcast %18 : vector<1x128xf32> to vector<16x128xf32>
    %20 = arith.addf %17, %19 : vector<16x128xf32>
    %21 = math.tanh %20 : vector<16x128xf32>
    %22 = vector.extract_strided_slice %21 {offsets = [0, 0], sizes = [16, 32], strides = [1, 1]} : vector<16x128xf32> to vector<16x32xf32>
    %23 = vector.extract_strided_slice %21 {offsets = [0, 32], sizes = [16, 32], strides = [1, 1]} : vector<16x128xf32> to vector<16x32xf32>
    %24 = vector.extract_strided_slice %21 {offsets = [0, 64], sizes = [16, 32], strides = [1, 1]} : vector<16x128xf32> to vector<16x32xf32>
    %25 = vector.extract_strided_slice %21 {offsets = [0, 96], sizes = [16, 32], strides = [1, 1]} : vector<16x128xf32> to vector<16x32xf32>
    %26 = tpu.concatenate %22, %23, %24, %25 in 0 : vector<16x32xf32>, vector<16x32xf32>, vector<16x32xf32>, vector<16x32xf32> -> vector<64x32xf32>
    %c0_12 = arith.constant 0 : index
    %c0_13 = arith.constant 0 : index
    %27 = vector.load %arg6[%c0_12, %c0_13] : memref<32x128xf32, #tpu.memory_space<vmem>>, vector<32x128xf32>
    %cst_14 = arith.constant dense<0.000000e+00> : vector<64x128xf32>
    %28 = tpu.matmul %26, %27, %cst_14 {dimension_numbers = #tpu.dot_dimension_numbers<[1], [0], [0], [1], [0, 0, 1, 1], [], []>} : vector<64x32xf32>, vector<32x128xf32>, vector<64x128xf32> -> vector<64x128xf32>
    %c0_15 = arith.constant 0 : index
    %c0_16 = arith.constant 0 : index
    %29 = vector.load %arg7[%c0_15, %c0_16] : memref<1x128xf32, #tpu.memory_space<vmem>>, vector<1x128xf32>
    %30 = vector.broadcast %29 : vector<1x128xf32> to vector<64x128xf32>
    %31 = arith.addf %28, %30 : vector<64x128xf32>
    %cst_17 = arith.constant dense<0xFF800000> : vector<64xf32>
    %32 = vector.multi_reduction <maximumf>, %31, %cst_17 [1] : vector<64x128xf32> to vector<64xf32>
    %33 = vector.shape_cast %32 : vector<64xf32> to vector<64x1xf32>
    %34 = vector.broadcast %33 : vector<64x1xf32> to vector<64x128xf32>
    %35 = arith.subf %31, %34 : vector<64x128xf32>
    %36 = math.exp %35 : vector<64x128xf32>
    %cst_18 = arith.constant dense<0.000000e+00> : vector<64xf32>
    %37 = vector.multi_reduction <add>, %36, %cst_18 [1] : vector<64x128xf32> to vector<64xf32>
    %38 = vector.shape_cast %37 : vector<64xf32> to vector<64x1xf32>
    %39 = tpu.reciprocal %38 {approx = true} : vector<64x1xf32> -> vector<64x1xf32>
    %40 = vector.broadcast %39 : vector<64x1xf32> to vector<64x128xf32>
    %41 = arith.mulf %36, %40 : vector<64x128xf32>
    %42 = vector.extract_strided_slice %15 {offsets = [0, 0], sizes = [16, 1], strides = [1, 1]} : vector<16x4xf32> to vector<16x1xf32>
    %43 = vector.extract_strided_slice %41 {offsets = [0, 0], sizes = [16, 128], strides = [1, 1]} : vector<64x128xf32> to vector<16x128xf32>
    %44 = vector.broadcast %42 : vector<16x1xf32> to vector<16x128xf32>
    %45 = arith.mulf %44, %43 : vector<16x128xf32>
    %46 = vector.extract_strided_slice %15 {offsets = [0, 1], sizes = [16, 1], strides = [1, 1]} : vector<16x4xf32> to vector<16x1xf32>
    %47 = vector.extract_strided_slice %41 {offsets = [16, 0], sizes = [16, 128], strides = [1, 1]} : vector<64x128xf32> to vector<16x128xf32>
    %48 = vector.broadcast %46 : vector<16x1xf32> to vector<16x128xf32>
    %49 = arith.mulf %48, %47 : vector<16x128xf32>
    %50 = arith.addf %45, %49 : vector<16x128xf32>
    %51 = vector.extract_strided_slice %15 {offsets = [0, 2], sizes = [16, 1], strides = [1, 1]} : vector<16x4xf32> to vector<16x1xf32>
    %52 = vector.extract_strided_slice %41 {offsets = [32, 0], sizes = [16, 128], strides = [1, 1]} : vector<64x128xf32> to vector<16x128xf32>
    %53 = vector.broadcast %51 : vector<16x1xf32> to vector<16x128xf32>
    %54 = arith.mulf %53, %52 : vector<16x128xf32>
    %55 = arith.addf %50, %54 : vector<16x128xf32>
    %56 = vector.extract_strided_slice %15 {offsets = [0, 3], sizes = [16, 1], strides = [1, 1]} : vector<16x4xf32> to vector<16x1xf32>
    %57 = vector.extract_strided_slice %41 {offsets = [48, 0], sizes = [16, 128], strides = [1, 1]} : vector<64x128xf32> to vector<16x128xf32>
    %58 = vector.broadcast %56 : vector<16x1xf32> to vector<16x128xf32>
    %59 = arith.mulf %58, %57 : vector<16x128xf32>
    %60 = arith.addf %55, %59 : vector<16x128xf32>
    %c0_19 = arith.constant 0 : index
    %c0_20 = arith.constant 0 : index
    %61 = vector.load %arg8[%c0_19, %c0_20] : memref<16x128xf32, #tpu.memory_space<vmem>>, vector<16x128xf32>
    tpu.vector_store %arg8[%c0_19, %c0_20], %60 {strides = array<i32>} : memref<16x128xf32, #tpu.memory_space<vmem>>, vector<16x128xf32>,
    return
  }
  func.func @transform_0(%arg0: i32) -> (i32, i32) {
    %c0_i32 = arith.constant 0 : i32
    %c0_i32_0 = arith.constant 0 : i32
    return %arg0, %c0_i32 : i32, i32
  }
  func.func @transform_1(%arg0: i32) -> (i32, i32) {
    %c0_i32 = arith.constant 0 : i32
    %c0_i32_0 = arith.constant 0 : i32
    %c0_i32_1 = arith.constant 0 : i32
    return %c0_i32, %c0_i32_0 : i32, i32
  }
  func.func @transform_2(%arg0: i32) -> (i32, i32) {
    %c0_i32 = arith.constant 0 : i32
    %c0_i32_0 = arith.constant 0 : i32
    %c0_i32_1 = arith.constant 0 : i32
    return %c0_i32, %c0_i32_0 : i32, i32
  }
  func.func @transform_3(%arg0: i32) -> (i32, i32) {
    %c0_i32 = arith.constant 0 : i32
    %c0_i32_0 = arith.constant 0 : i32
    %c0_i32_1 = arith.constant 0 : i32
    return %c0_i32, %c0_i32_0 : i32, i32
  }
  func.func @transform_4(%arg0: i32) -> (i32, i32) {
    %c0_i32 = arith.constant 0 : i32
    %c0_i32_0 = arith.constant 0 : i32
    %c0_i32_1 = arith.constant 0 : i32
    return %c0_i32, %c0_i32_0 : i32, i32
  }
  func.func @transform_5(%arg0: i32) -> (i32, i32) {
    %c0_i32 = arith.constant 0 : i32
    %c0_i32_0 = arith.constant 0 : i32
    %c0_i32_1 = arith.constant 0 : i32
    return %c0_i32, %c0_i32_0 : i32, i32
  }
  func.func @transform_6(%arg0: i32) -> (i32, i32) {
    %c0_i32 = arith.constant 0 : i32
    %c0_i32_0 = arith.constant 0 : i32
    %c0_i32_1 = arith.constant 0 : i32
    return %c0_i32, %c0_i32_0 : i32, i32
  }
  func.func @transform_7(%arg0: i32) -> (i32, i32) {
    %c0_i32 = arith.constant 0 : i32
    %c0_i32_0 = arith.constant 0 : i32
    return %arg0, %c0_i32 : i32, i32
  }
}

</mosaic_0001>

<llo_original>
// kernel: tpu_custom_call.1
$region0: #{tpu_custom_call.1}
  #allocation0 [shape = 'u32[]', space=smem, size = 0x4, offset = 0x4, fixed_abs, tag = 'smem constant byte address 0x4 - core index']
  #allocation1 [shape = 'u32[72,128]{1,0:T(1,128)}', space=vmem, size = 0x9000, scoped, tag = 'internal scratch']
  %s0 = inlined_call_operand.hbm [shape: f32[16,32], index: 0, kind: input, shape index: {}]
  %s1 = inlined_call_operand.vmem [shape: f32[32,4], index: 1, kind: input, shape index: {}]
  %s2 = inlined_call_operand.vmem [shape: f32[1,4], index: 2, kind: input, shape index: {}]
  %s3 = inlined_call_operand.vmem [shape: f32[32,128], index: 3, kind: input, shape index: {}]
  %s4 = inlined_call_operand.vmem [shape: f32[1,128], index: 4, kind: input, shape index: {}]
  %s5 = inlined_call_operand.hbm [shape: f32[32,128], index: 5, kind: input, shape index: {}]
  %s6 = inlined_call_operand.vmem [shape: f32[1,128], index: 6, kind: input, shape index: {}]
  %s7 = inlined_call_operand.hbm [shape: f32[16,128], index: 7, kind: output, shape index: {}]
  %s8 = sld [smem:[#allocation0]]
  $region46: #{tpu_custom_call.1} parent=0
    _
  %s10 = ssub.s32 1, %s8
  %s11 = scalar_select 0, %s10, %s8
  $region1: #{tpu_custom_call.1} parent=0
    #allocation2 [shape = 'u8[8192]{0}', space=vmem, size = 0x2000, scoped, tag = 'input window, operand 0, single buffered']
    #allocation3 [shape = 's32[1]{0}', space=sflag, size = 0x4, scoped, tag = 'scoped memory for tpu_custom_call.1']
    #allocation4 [shape = 's32[1]{0}', space=sflag, size = 0x4, scoped, tag = 'scoped memory for tpu_custom_call.1']
    #allocation5 [shape = 'u8[16384]{0}', space=vmem, size = 0x4000, scoped, tag = 'input window, operand 5, single buffered']
    #allocation6 [shape = 's32[1]{0}', space=sflag, size = 0x4, scoped, tag = 'scoped memory for tpu_custom_call.1']
    #allocation7 [shape = 'u8[8192]{0}', space=vmem, size = 0x2000, scoped, tag = 'output window, operand 0, single buffered']
    %12 = vsyncpa [#allocation3], 0
    %13 = vsyncpa [#allocation6], 0
    %14 = vsyncpa [#allocation4], 0
    // Predicated region
    $region2: #{tpu_custom_call.1} parent=1 // pred_check
      _
    $region3: #{tpu_custom_call.1} parent=1 // pred_check_branch
      %16 = sbr.rel (0) target = $region5
    $region4: #{tpu_custom_call.1} parent=1 // pred_region
      %18 = vsyncadd [#allocation3], 0
      %s19 = sshll.u32 %s0, 4
      %s20 = int_to_ptr.hbm [resolvable:$true] %s19
      %s21 = sshll.u32 [#allocation2], 4
      %s22 = int_to_ptr.vmem [resolvable:$true] %s21
      %27 = dma.hbm_to_vmem [thread:$0]  %s20, 256, %s22, [#allocation3], 128, 128, 8
    $region5: #{tpu_custom_call.1} parent=1 // pred_fallthru
      _
    // Predicated region
    $region6: #{tpu_custom_call.1} parent=1 // pred_check
      _
    $region7: #{tpu_custom_call.1} parent=1 // pred_check_branch
      %29 = sbr.rel (0) target = $region9
    $region8: #{tpu_custom_call.1} parent=1 // pred_region
      _
    $region9: #{tpu_custom_call.1} parent=1 // pred_fallthru
      _
    // Predicated region
    $region10: #{tpu_custom_call.1} parent=1 // pred_check
      _
    $region11: #{tpu_custom_call.1} parent=1 // pred_check_branch
      %31 = sbr.rel (0) target = $region13
    $region12: #{tpu_custom_call.1} parent=1 // pred_region
      _
    $region13: #{tpu_custom_call.1} parent=1 // pred_fallthru
      _
    // Predicated region
    $region14: #{tpu_custom_call.1} parent=1 // pred_check
      _
    $region15: #{tpu_custom_call.1} parent=1 // pred_check_branch
      %33 = sbr.rel (0) target = $region17
    $region16: #{tpu_custom_call.1} parent=1 // pred_region
      _
    $region17: #{tpu_custom_call.1} parent=1 // pred_fallthru
      _
    // Predicated region
    $region18: #{tpu_custom_call.1} parent=1 // pred_check
      _
    $region19: #{tpu_custom_call.1} parent=1 // pred_check_branch
      %35 = sbr.rel (0) target = $region21
    $region20: #{tpu_custom_call.1} parent=1 // pred_region
      _
    $region21: #{tpu_custom_call.1} parent=1 // pred_fallthru
      _
    // Predicated region
    $region22: #{tpu_custom_call.1} parent=1 // pred_check
      _
    $region23: #{tpu_custom_call.1} parent=1 // pred_check_branch
      %37 = sbr.rel (0) target = $region25
    $region24: #{tpu_custom_call.1} parent=1 // pred_region
      %39 = vsyncadd [#allocation6], 0
      %s40 = sshll.u32 %s5, 4
      %s41 = int_to_ptr.hbm [resolvable:$true] %s40
      %s42 = sshll.u32 [#allocation5], 4
      %s43 = int_to_ptr.vmem [resolvable:$true] %s42
      %48 = dma.hbm_to_vmem [thread:$0]  %s41, 512, %s43, [#allocation6], 128, 128, 8
    $region25: #{tpu_custom_call.1} parent=1 // pred_fallthru
      _
    // Predicated region
    $region26: #{tpu_custom_call.1} parent=1 // pred_check
      _
    $region27: #{tpu_custom_call.1} parent=1 // pred_check_branch
      %50 = sbr.rel (0) target = $region29
    $region28: #{tpu_custom_call.1} parent=1 // pred_region
      _
    $region29: #{tpu_custom_call.1} parent=1 // pred_fallthru
      _
    // Predicated region
    $region30: #{tpu_custom_call.1} parent=1 // pred_check
      _
    $region31: #{tpu_custom_call.1} parent=1 // pred_check_branch
      %52 = sbr.rel (0) target = $region33
    $region32: #{tpu_custom_call.1} parent=1 // pred_region
      %54 = dma.done [#allocation3], 256
    $region33: #{tpu_custom_call.1} parent=1 // pred_fallthru
      _
    // Predicated region
    $region34: #{tpu_custom_call.1} parent=1 // pred_check
      _
    $region35: #{tpu_custom_call.1} parent=1 // pred_check_branch
      %56 = sbr.rel (0) target = $region37
    $region36: #{tpu_custom_call.1} parent=1 // pred_region
      %58 = dma.done [#allocation6], 512
    $region37: #{tpu_custom_call.1} parent=1 // pred_fallthru
      _
    %v59 = vld [vmem:[#allocation2] sm:$0xff]
    %v60 = vld [vmem:[#allocation2 + $0x8] sm:$0xff]
    %v61 = vld [vmem:[%s1] sm:$0xff]
    %v62 = vld [vmem:[%s1 + $0x8] sm:$0xff]
    %v63 = vld [vmem:[%s1 + $0x10] sm:$0xff]
    %v64 = vld [vmem:[%s1 + $0x18] sm:$0xff]
    %v65 = vld [vmem:[%s2] sm:$0x1]
    %v67 = vperm.slane %v65, 0
    %vm69 = vcmask 261120
    %v71 = vsel %vm69, %v59, 0
    %v74 = vsel %vm69, %v60, 0
    %76 = vmatpush.msra.mxu0 0.0
    %77 = vmatpush.msra.mxu0 0.0
    %78 = vmatpush.msra.mxu0 0.0
    %79 = vmatpush.msra.mxu0 0.0
    %80 = vmatpush.msra.mxu0 0.0
    %81 = vmatpush.msra.mxu0 0.0
    %82 = vmatpush.msra.mxu0 0.0
    %83 = vmatpush.msra.mxu0 0.0
    %84 = vmatpush.msra.mxu0 0.0
    %85 = vmatpush.msra.mxu0 0.0
    %86 = vmatpush.msra.mxu0 0.0
    %87 = vmatpush.msra.mxu0 0.0
    %88 = vmatpush.msra.mxu0 %v64
    %89 = vmatpush.msra.mxu0 %v63
    %90 = vmatpush.msra.mxu0 %v62
    %91 = vmatpush.msra.mxu0 %v61
    %92 = vmatmul.f32.gmra.mxu0 %v71
    %v93 = vpop.f32.mrf.mxu0
    %v94 = vadd.f32 %v67, %v93
    %95 = vmatmul.f32.gmra.mxu0 %v74
    %v96 = vpop.f32.mrf.mxu0
    %v97 = vadd.f32 %v67, %v96
    %98 = vdwg.mxu0
    %vm99 = vcmask 31744
    %v100 = vsel %vm99, %v94, -inf
    %101 = vmax.xlane.f32.xlu0 %v100
    %v102 = vpop.xlane.xlu0 %101
    %v103 = vsel %vm99, %v97, -inf
    %104 = vmax.xlane.f32.xlu0 %v103
    %v105 = vpop.xlane.xlu0 %104
    %v106 = vsub.f32 %v94, %v102
    %v107 = vsub.f32 %v97, %v105
    %v108 = vmul.f32 %v106, 1.442695
    %v109 = vpow.pop %v108
    %v110 = vmul.f32 %v107, 1.442695
    %v111 = vpow.pop %v110
    %v112 = vsel %vm99, %v109, 0.0
    %113 = vadd.xlane.f32.xlu0 %v112
    %v114 = vpop.xlane.xlu0 %113
    %v115 = vsel %vm99, %v111, 0.0
    %116 = vadd.xlane.f32.xlu0 %v115
    %v117 = vpop.xlane.xlu0 %116
    %v118 = vrcp.pop %v114
    %v119 = vrcp.pop %v117
    %v120 = vmul.f32 %v109, %v118
    %v121 = vmul.f32 %v111, %v119
    %v122 = vld [vmem:[%s3] sm:$0xff]
    %v123 = vld [vmem:[%s3 + $0x8] sm:$0xff]
    %v124 = vld [vmem:[%s3 + $0x10] sm:$0xff]
    %v125 = vld [vmem:[%s3 + $0x18] sm:$0xff]
    %v126 = vld [vmem:[%s4] sm:$0x1]
    %v128 = vperm.slane %v126, 0
    %130 = vmatpush.msra.mxu0 0.0
    %131 = vmatpush.msra.mxu0 0.0
    %132 = vmatpush.msra.mxu0 0.0
    %133 = vmatpush.msra.mxu0 0.0
    %134 = vmatpush.msra.mxu0 0.0
    %135 = vmatpush.msra.mxu0 0.0
    %136 = vmatpush.msra.mxu0 0.0
    %137 = vmatpush.msra.mxu0 0.0
    %138 = vmatpush.msra.mxu0 0.0
    %139 = vmatpush.msra.mxu0 0.0
    %140 = vmatpush.msra.mxu0 0.0
    %141 = vmatpush.msra.mxu0 0.0
    %142 = vmatpush.msra.mxu0 %v125
    %143 = vmatpush.msra.mxu0 %v124
    %144 = vmatpush.msra.mxu0 %v123
    %145 = vmatpush.msra.mxu0 %v122
    %146 = vmatmul.f32.gmra.mxu0 %v71
    %v147 = vpop.f32.mrf.mxu0
    %v148 = vadd.f32 %v128, %v147
    %149 = vmatmul.f32.gmra.mxu0 %v74
    %v150 = vpop.f32.mrf.mxu0
    %v151 = vadd.f32 %v128, %v150
    %152 = vdwg.mxu0
    %v153 = vtanh.pop %v148
    %v154 = vtanh.pop %v151
    %157 = vrot.lane.b32.xlu0 %v153, 96
    %v158 = vpop.permute.xlu0 %157
    %159 = vrot.lane.b32.xlu0 %v154, 96
    %v160 = vpop.permute.xlu0 %159
    %161 = vrot.lane.b32.xlu0 %v153, 64
    %v162 = vpop.permute.xlu0 %161
    %163 = vrot.lane.b32.xlu0 %v154, 64
    %v164 = vpop.permute.xlu0 %163
    %165 = vrot.lane.b32.xlu0 %v153, 32
    %v166 = vpop.permute.xlu0 %165
    %167 = vrot.lane.b32.xlu0 %v154, 32
    %v168 = vpop.permute.xlu0 %167
    %v169 = vld [vmem:[#allocation5] sm:$0xff]
    %v170 = vld [vmem:[#allocation5 + $0x8] sm:$0xff]
    %v171 = vld [vmem:[#allocation5 + $0x10] sm:$0xff]
    %v172 = vld [vmem:[#allocation5 + $0x18] sm:$0xff]
    %v173 = vld [vmem:[%s6] sm:$0x1]
    %v175 = vperm.slane %v173, 0
    %v177 = vsel %vm69, %v153, 0
    %v179 = vsel %vm69, %v154, 0
    %v181 = vsel %vm69, %v158, 0
    %v183 = vsel %vm69, %v160, 0
    %v185 = vsel %vm69, %v162, 0
    %v187 = vsel %vm69, %v164, 0
    %v189 = vsel %vm69, %v166, 0
    %v191 = vsel %vm69, %v168, 0
    %193 = vmatpush.msra.mxu0 0.0
    %194 = vmatpush.msra.mxu0 0.0
    %195 = vmatpush.msra.mxu0 0.0
    %196 = vmatpush.msra.mxu0 0.0
    %197 = vmatpush.msra.mxu0 0.0
    %198 = vmatpush.msra.mxu0 0.0
    %199 = vmatpush.msra.mxu0 0.0
    %200 = vmatpush.msra.mxu0 0.0
    %201 = vmatpush.msra.mxu0 0.0
    %202 = vmatpush.msra.mxu0 0.0
    %203 = vmatpush.msra.mxu0 0.0
    %204 = vmatpush.msra.mxu0 0.0
    %205 = vmatpush.msra.mxu0 %v172
    %206 = vmatpush.msra.mxu0 %v171
    %207 = vmatpush.msra.mxu0 %v170
    %208 = vmatpush.msra.mxu0 %v169
    %209 = vmatmul.f32.gmra.mxu0 %v177
    %v210 = vpop.f32.mrf.mxu0
    %v211 = vadd.f32 %v175, %v210
    %212 = vmatmul.f32.gmra.mxu0 %v179
    %v213 = vpop.f32.mrf.mxu0
    %v214 = vadd.f32 %v175, %v213
    %215 = vmatmul.f32.gmra.mxu0 %v181
    %v216 = vpop.f32.mrf.mxu0
    %v217 = vadd.f32 %v175, %v216
    %218 = vmatmul.f32.gmra.mxu0 %v183
    %v219 = vpop.f32.mrf.mxu0
    %v220 = vadd.f32 %v175, %v219
    %221 = vmatmul.f32.gmra.mxu0 %v185
    %v222 = vpop.f32.mrf.mxu0
    %v223 = vadd.f32 %v175, %v222
    %224 = vmatmul.f32.gmra.mxu0 %v187
    %v225 = vpop.f32.mrf.mxu0
    %v226 = vadd.f32 %v175, %v225
    %227 = vmatmul.f32.gmra.mxu0 %v189
    %v228 = vpop.f32.mrf.mxu0
    %v229 = vadd.f32 %v175, %v228
    %230 = vmatmul.f32.gmra.mxu0 %v191
    %v231 = vpop.f32.mrf.mxu0
    %v232 = vadd.f32 %v175, %v231
    %233 = vdwg.mxu0
    %234 = vmax.xlane.f32.xlu0 %v211
    %v235 = vpop.xlane.xlu0 %234
    %236 = vmax.xlane.f32.xlu0 %v214
    %v237 = vpop.xlane.xlu0 %236
    %238 = vmax.xlane.f32.xlu0 %v217
    %v239 = vpop.xlane.xlu0 %238
    %240 = vmax.xlane.f32.xlu0 %v220
    %v241 = vpop.xlane.xlu0 %240
    %242 = vmax.xlane.f32.xlu0 %v223
    %v243 = vpop.xlane.xlu0 %242
    %244 = vmax.xlane.f32.xlu0 %v226
    %v245 = vpop.xlane.xlu0 %244
    %246 = vmax.xlane.f32.xlu0 %v229
    %v247 = vpop.xlane.xlu0 %246
    %248 = vmax.xlane.f32.xlu0 %v232
    %v249 = vpop.xlane.xlu0 %248
    %v250 = vsub.f32 %v211, %v235
    %v251 = vsub.f32 %v214, %v237
    %v252 = vsub.f32 %v217, %v239
    %v253 = vsub.f32 %v220, %v241
    %v254 = vsub.f32 %v223, %v243
    %v255 = vsub.f32 %v226, %v245
    %v256 = vsub.f32 %v229, %v247
    %v257 = vsub.f32 %v232, %v249
    %v258 = vmul.f32 %v250, 1.442695
    %v259 = vpow.pop %v258
    %v260 = vmul.f32 %v251, 1.442695
    %v261 = vpow.pop %v260
    %v262 = vmul.f32 %v252, 1.442695
    %v263 = vpow.pop %v262
    %v264 = vmul.f32 %v253, 1.442695
    %v265 = vpow.pop %v264
    %v266 = vmul.f32 %v254, 1.442695
    %v267 = vpow.pop %v266
    %v268 = vmul.f32 %v255, 1.442695
    %v269 = vpow.pop %v268
    %v270 = vmul.f32 %v256, 1.442695
    %v271 = vpow.pop %v270
    %v272 = vmul.f32 %v257, 1.442695
    %v273 = vpow.pop %v272
    %274 = vadd.xlane.f32.xlu0 %v259
    %v275 = vpop.xlane.xlu0 %274
    %276 = vadd.xlane.f32.xlu0 %v261
    %v277 = vpop.xlane.xlu0 %276
    %278 = vadd.xlane.f32.xlu0 %v263
    %v279 = vpop.xlane.xlu0 %278
    %280 = vadd.xlane.f32.xlu0 %v265
    %v281 = vpop.xlane.xlu0 %280
    %282 = vadd.xlane.f32.xlu0 %v267
    %v283 = vpop.xlane.xlu0 %282
    %284 = vadd.xlane.f32.xlu0 %v269
    %v285 = vpop.xlane.xlu0 %284
    %286 = vadd.xlane.f32.xlu0 %v271
    %v287 = vpop.xlane.xlu0 %286
    %288 = vadd.xlane.f32.xlu0 %v273
    %v289 = vpop.xlane.xlu0 %288
    %v290 = vrcp.pop %v275
    %v291 = vrcp.pop %v277
    %v292 = vrcp.pop %v279
    %v293 = vrcp.pop %v281
    %v294 = vrcp.pop %v283
    %v295 = vrcp.pop %v285
    %v296 = vrcp.pop %v287
    %v297 = vrcp.pop %v289
    %v298 = vmul.f32 %v259, %v290
    %v299 = vmul.f32 %v261, %v291
    %v300 = vmul.f32 %v263, %v292
    %v301 = vmul.f32 %v265, %v293
    %v302 = vmul.f32 %v267, %v294
    %v303 = vmul.f32 %v269, %v295
    %v304 = vmul.f32 %v271, %v296
    %v305 = vmul.f32 %v273, %v297
    %307 = vset.pattern.permute.xlu0 0
    %308 = vperm.xlu0 %307, %v120
    %v309 = vpop.permute.xlu0 %308
    %312 = vset.pattern.permute.xlu0 0
    %313 = vperm.xlu0 %312, %v121
    %v314 = vpop.permute.xlu0 %313
    %v316 = vmul.f32 %v309, %v298
    %v317 = vmul.f32 %v314, %v299
    %318 = vset.pattern.permute.xlu0 1
    %319 = vperm.xlu0 %318, %v120
    %v320 = vpop.permute.xlu0 %319
    %322 = vset.pattern.permute.xlu0 1
    %323 = vperm.xlu0 %322, %v121
    %v324 = vpop.permute.xlu0 %323
    %v326 = vmul.f32 %v320, %v300
    %v327 = vmul.f32 %v324, %v301
    %v328 = vadd.f32 %v316, %v326
    %v329 = vadd.f32 %v317, %v327
    %330 = vset.pattern.permute.xlu0 2
    %331 = vperm.xlu0 %330, %v120
    %v332 = vpop.permute.xlu0 %331
    %334 = vset.pattern.permute.xlu0 2
    %335 = vperm.xlu0 %334, %v121
    %v336 = vpop.permute.xlu0 %335
    %v338 = vmul.f32 %v332, %v302
    %v339 = vmul.f32 %v336, %v303
    %v340 = vadd.f32 %v328, %v338
    %v341 = vadd.f32 %v329, %v339
    %342 = vset.pattern.permute.xlu0 3
    %343 = vperm.xlu0 %342, %v120
    %v344 = vpop.permute.xlu0 %343
    %346 = vset.pattern.permute.xlu0 3
    %347 = vperm.xlu0 %346, %v121
    %v348 = vpop.permute.xlu0 %347
    %v350 = vmul.f32 %v344, %v304
    %v351 = vmul.f32 %v348, %v305
    %v352 = vadd.f32 %v340, %v350
    %v353 = vadd.f32 %v341, %v351
    %354 = vst [vmem:[#allocation7] sm:$0xff] %v352
    %355 = vst [vmem:[#allocation7 + $0x8] sm:$0xff] %v353
    // Predicated region
    $region38: #{tpu_custom_call.1} parent=1 // pred_check
      _
    $region39: #{tpu_custom_call.1} parent=1 // pred_check_branch
      %357 = sbr.rel (0) target = $region41
    $region40: #{tpu_custom_call.1} parent=1 // pred_region
      %359 = vsyncadd [#allocation4], 0
      %s360 = sshll.u32 [#allocation7], 4
      %s361 = int_to_ptr.vmem [resolvable:$true] %s360
      %s362 = sshll.u32 %s7, 4
      %s363 = int_to_ptr.hbm [resolvable:$true] %s362
      %368 = dma.vmem_to_hbm [thread:$0]  %s361, 256, %s363, [#allocation4], 128, 128, 8
    $region41: #{tpu_custom_call.1} parent=1 // pred_fallthru
      _
    // Predicated region
    $region42: #{tpu_custom_call.1} parent=1 // pred_check
      _
    $region43: #{tpu_custom_call.1} parent=1 // pred_check_branch
      %370 = sbr.rel (0) target = $region45
    $region44: #{tpu_custom_call.1} parent=1 // pred_region
      %372 = dma.done [#allocation4], 256
    $region45: #{tpu_custom_call.1} parent=1 // pred_fallthru
      _
    %373 = vsyncpa [#allocation3], 1
    %374 = vsyncpa [#allocation6], 1
    %375 = vsyncpa [#allocation4], 1

</llo_original>
